<compile_context>
chip_gen: v7x
topology: tpu7x:2x2x1
jax: 0.10.0
libtpu: 0.0.40
codegen_flags: <defaults>
</compile_context>

<pallas_src>
import numpy as np
import jax
import jax.numpy as jnp
from jax import lax
from jax.experimental import pallas as pl
from jax.experimental.pallas import tpu as pltpu

LOG2 = np.float32(np.log(2.0))
NT_DIM_NUMBERS = (((1,), (1,)), ((), ()))   # contract feats of both operands (trans_b)


# --------------------------------------------------------------------------
# roll-based 'same' conv helper (runs inside kernel 1)
# --------------------------------------------------------------------------
def _conv1d_same(x, taps):
    """Zero-padded 'same' cross-correlation along the lane axis of a (1, spat)
    row -- exactly F.conv1d(x, taps, padding='same') for odd-length taps.
    len(taps) XLU rolls + VPU FMAs; no MXU, no (spat, spat) matrix."""
    spat = x.shape[-1]
    pad = len(taps) // 2
    pos = lax.broadcasted_iota(jnp.int32, x.shape, 1)
    out = jnp.zeros_like(x)
    for t, tap in enumerate(taps):
        d = t - pad                                 # y[i] += tap * x[i + d]
        shifted = x if d == 0 else pltpu.roll(x, (-d) % spat, axis=1)
        valid = (pos + d >= 0) & (pos + d < spat)   # zero 'same' padding
        out = out + float(tap) * jnp.where(valid, shifted, 0.0)
    return out


# --------------------------------------------------------------------------
# Kernel 1: W_prob -> softmax -> entropy -> gaussian conv -> sobel conv -> STE
#           + per-batch transition count (for the data-dependent cluster size)
# --------------------------------------------------------------------------
def _make_entropy_kernel(gauss_taps, sobel_taps):
    def kernel(x_ref, w_ref, b_ref, ent_ref, nt_ref):
        x = x_ref[0]                                    # (spat, feats), natural layout
        # logits = W_prob(k_row[b]) as a (1, spat) lane-dense row.  w_ref is
        # zero-padded to 8 rows (full sublane tile); row 0 is the real weight.
        logits8 = lax.dot_general(w_ref[...], x, NT_DIM_NUMBERS,
                                  preferred_element_type=jnp.float32)
        logits = logits8[0:1, :] + b_ref[0, 0]          # (1, spat), scalar bias from SMEM
        # softmax over spat (+1e-8 as in the reference), entropy base 2
        m = jnp.max(logits, axis=-1, keepdims=True)
        e = jnp.exp(logits - m)
        p = e / jnp.sum(e, axis=-1, keepdims=True) + 1e-8
        ent = -p * jnp.log(p) / LOG2
        smoothed = _conv1d_same(ent, gauss_taps)        # gaussian smoothing
        step = _conv1d_same(smoothed, sobel_taps)       # 2nd-derivative filter
        step_bin = (step > 0.0).astype(jnp.float32)     # STE forward: (x > 0).float()
        ent_ref[0] = smoothed
        # Count of internal 0/1 transitions T.  torch's per-batch mean region
        # length is exactly spat / (T + 1), so T is all the host needs.
        spat = x.shape[0]
        pos = lax.broadcasted_iota(jnp.int32, step_bin.shape, 1)
        prev = pltpu.roll(step_bin, 1, axis=1)          # prev[i] = step_bin[i-1]
        trans = jnp.where(pos >= 1, jnp.abs(step_bin - prev), 0.0)
        nt_ref[0] = jnp.sum(trans, axis=-1, keepdims=True)
    return kernel


def entropy_pass(k_row, w8, b, gauss_taps, sobel_taps):
    bs, spat, feats = k_row.shape
    ent, ntr = pl.pallas_call(
        _make_entropy_kernel(gauss_taps, sobel_taps),
        out_shape=(jax.ShapeDtypeStruct((bs, 1, spat), jnp.float32),
                   jax.ShapeDtypeStruct((bs, 1, 1), jnp.float32)),
        grid_spec=pltpu.PrefetchScalarGridSpec(
            num_scalar_prefetch=0,
            grid=(bs,),
            in_specs=[
                pl.BlockSpec((1, spat, feats), lambda i: (i, 0, 0)),
                pl.BlockSpec((8, feats), lambda i: (0, 0)),
                pl.BlockSpec(memory_space=pltpu.MemorySpace.SMEM),
            ],
            out_specs=[
                pl.BlockSpec((1, 1, spat), lambda i: (i, 0, 0)),
                pl.BlockSpec((1, 1, 1), lambda i: (i, 0, 0)),
            ],
        ),
        compiler_params=pltpu.CompilerParams(
            dimension_semantics=("parallel",)),   # batches independent -> v7x dual-TC
    )(k_row, w8, b)
    return ent[:, 0, :], ntr[:, 0, 0]             # (bs, spat), (bs,)


# --------------------------------------------------------------------------
# Kernel 2: per-cluster softmax of smoothed entropy + weighted sum over cluster
#           axis, on packed (n, clst*feats) slabs (zero-copy views of the inputs)
# --------------------------------------------------------------------------
def _make_cluster_kernel(clst, feats):
    def kernel(ent_ref, kr_ref, kc_ref, v_ref, kro_ref, kco_ref, vo_ref):
        ent = ent_ref[0]                                # (n, clst)
        m = jnp.max(ent, axis=-1, keepdims=True)
        e = jnp.exp(ent - m)
        w = e / jnp.sum(e, axis=-1, keepdims=True)      # per-cluster softmax weights

        def wsum(x):                                    # x: (n, clst*feats) packed
            acc = w[:, 0:1] * x[:, 0:feats]
            for ci in range(1, clst):
                acc = acc + w[:, ci:ci + 1] * x[:, ci * feats:(ci + 1) * feats]
            return acc                                  # (n, feats)

        kro_ref[0] = wsum(kr_ref[0])
        kco_ref[0] = wsum(kc_ref[0])
        vo_ref[0] = wsum(v_ref[0])
    return kernel


def cluster_pass(ent_c, kr_p, kc_p, v_p, clst, feats):
    bs, n, cf = kr_p.shape
    out_sd = jax.ShapeDtypeStruct((bs, n, feats), jnp.float32)
    packed_spec = pl.BlockSpec((1, n, cf), lambda i: (i, 0, 0))
    out_spec = pl.BlockSpec((1, n, feats), lambda i: (i, 0, 0))
    return pl.pallas_call(
        _make_cluster_kernel(clst, feats),
        out_shape=(out_sd, out_sd, out_sd),
        grid_spec=pltpu.PrefetchScalarGridSpec(
            num_scalar_prefetch=0,
            grid=(bs,),
            in_specs=[pl.BlockSpec((1, n, clst), lambda i: (i, 0, 0)),
                      packed_spec, packed_spec, packed_spec],
            out_specs=[out_spec, out_spec, out_spec],
        ),
        compiler_params=pltpu.CompilerParams(
            dimension_semantics=("parallel",)),
    )(ent_c, kr_p, kc_p, v_p)


# --------------------------------------------------------------------------
# Host glue: filter taps, data-dependent cluster size, packed views
# --------------------------------------------------------------------------
def gaussian_taps(sigma):
    x = np.arange(-(3 * sigma - 1), 3 * sigma, dtype=np.float64)
    k = (1.0 / (sigma * np.sqrt(2.0 * np.pi))) * np.exp(-x ** 2 / (2.0 * sigma ** 2))
    return [float(t) for t in k.astype(np.float32)]


def clust_attn_forward(k_row, k_col, value, w_prob_w, w_prob_b, sigma):
    bs, spat, feats = k_row.shape
    v = value.reshape(bs, -1, feats)                    # value.flatten(1, 2)
    assert v.shape[1] == spat

    # W_prob weight padded to a full 8-row sublane tile; row 0 is the weight.
    w8 = jnp.zeros((8, feats), jnp.float32).at[0, :].set(
        w_prob_w.reshape(feats).astype(jnp.float32))
    b = w_prob_b.reshape(1, 1).astype(jnp.float32)

    entropy, ntrans = entropy_pass(k_row, w8, b,
                                   gaussian_taps(sigma), [-1.0, 2.0, -1.0])

    # TODO(synk): the data-dependent cluster size controls *static* reshape
    # shapes, so the round()/mean stays on host; only bs scalars (per-batch
    # transition counts) are pulled off-device, not the (bs, spat) step array.
    nt = np.asarray(jax.device_get(ntrans))             # exact small ints as f32
    means = [float(np.float32(spat) / np.float32(int(round(float(t))) + 1))
             for t in nt]
    clst_sh = int(round(float(np.mean(means))))
    clst_sh = max(clst_sh, 1)

    start = spat % clst_sh // 2
    end = spat - (spat % clst_sh - spat % clst_sh // 2)
    n = (end - start) // clst_sh

    # Zero-copy packed views: lane axis = clst_sh * feats.
    kr_p = k_row[:, start:end, :].reshape(bs, n, clst_sh * feats)
    kc_p = k_col[:, start:end, :].reshape(bs, n, clst_sh * feats)
    v_p = v[:, start:end, :].reshape(bs, n, clst_sh * feats)
    ent_c = entropy[:, start:end].reshape(bs, n, clst_sh)

    return cluster_pass(ent_c, kr_p, kc_p, v_p, clst_sh, feats)


if __name__ == "__main__":
    sigma = 2
    bs, H, W, feats = 2, 16, 16, 32
    spat = H * W

    key = jax.random.PRNGKey(0)
    k1, k2, k3, k4, k5 = jax.random.split(key, 5)
    k_row = jax.random.normal(k1, (bs, spat, feats), dtype=jnp.float32)
    k_col = jax.random.normal(k2, (bs, spat, feats), dtype=jnp.float32)
    value = jax.random.normal(k3, (bs, H, W, feats), dtype=jnp.float32)

    # W_prob: nn.Linear(d_model, 1) -- xavier_uniform weight, default-style bias
    bound = float(np.sqrt(6.0 / (feats + 1)))
    w_prob_w = jax.random.uniform(k4, (1, feats), minval=-bound, maxval=bound,
                                  dtype=jnp.float32)
    bbound = float(1.0 / np.sqrt(feats))
    w_prob_b = jax.random.uniform(k5, (1,), minval=-bbound, maxval=bbound,
                                  dtype=jnp.float32)

    k_row_out, k_col_out, v_out = clust_attn_forward(
        k_row, k_col, value, w_prob_w, w_prob_b, sigma)
    jax.block_until_ready((k_row_out, k_col_out, v_out))
    print("KERNEL_OK")
</pallas_src>

<mosaic_0001>
module attributes {stable_mosaic.version = 11 : i64} {
  func.func @kernel(%arg0: i32, %arg1: memref<1x256x32xf32, #tpu.memory_space<vmem>>, %arg2: memref<8x32xf32, #tpu.memory_space<vmem>>, %arg3: memref<1x1xf32, #tpu.memory_space<smem>>, %arg4: memref<1x1x256xf32, #tpu.memory_space<vmem>>, %arg5: memref<1x1x1xf32, #tpu.memory_space<vmem>>) attributes {dimension_semantics = [#tpu.dimension_semantics<parallel>], iteration_bounds = array<i64: 2>, scalar_prefetch = 0 : i64, scratch_operands = 0 : i64, tpu.core_type = #tpu.core_type<tc>, window_params = [{transform_indices = @transform_0, window_bounds = array<i64: 1, 256, 32>}, {pipeline_mode = #tpu.pipeline_mode<synchronous>, transform_indices = @transform_1, window_bounds = array<i64: 8, 32>}, {transform_indices = @transform_2, window_bounds = array<i64: 1, 1>}, {transform_indices = @transform_3, window_bounds = array<i64: 1, 1, 256>}, {transform_indices = @transform_4, window_bounds = array<i64: 1, 1, 1>}]} {
    %c0 = arith.constant 0 : index
    %c0_0 = arith.constant 0 : index
    %c0_1 = arith.constant 0 : index
    %0 = vector.load %arg1[%c0, %c0_0, %c0_1] : memref<1x256x32xf32, #tpu.memory_space<vmem>>, vector<1x256x32xf32>
    %1 = vector.shape_cast %0 : vector<1x256x32xf32> to vector<256x32xf32>
    %c0_2 = arith.constant 0 : index
    %c0_3 = arith.constant 0 : index
    %2 = vector.load %arg2[%c0_2, %c0_3] : memref<8x32xf32, #tpu.memory_space<vmem>>, vector<8x32xf32>
    %cst = arith.constant dense<0.000000e+00> : vector<8x256xf32>
    %3 = tpu.matmul %2, %1, %cst {dimension_numbers = #tpu.dot_dimension_numbers<[1], [1], [0], [0], [0, 0, 1, 0], [], []>} : vector<8x32xf32>, vector<256x32xf32>, vector<8x256xf32> -> vector<8x256xf32>
    %4 = vector.extract_strided_slice %3 {offsets = [0, 0], sizes = [1, 256], strides = [1, 1]} : vector<8x256xf32> to vector<1x256xf32>
    %c0_4 = arith.constant 0 : index
    %c0_5 = arith.constant 0 : index
    %5 = memref.load %arg3[%c0_4, %c0_5] : memref<1x1xf32, #tpu.memory_space<smem>>
    %6 = vector.broadcast %5 : f32 to vector<1x256xf32>
    %7 = arith.addf %4, %6 : vector<1x256xf32>
    %cst_6 = arith.constant dense<0xFF800000> : vector<1xf32>
    %8 = vector.multi_reduction <maximumf>, %7, %cst_6 [1] : vector<1x256xf32> to vector<1xf32>
    %9 = vector.shape_cast %8 : vector<1xf32> to vector<1x1xf32>
    %10 = vector.broadcast %9 : vector<1x1xf32> to vector<1x256xf32>
    %11 = arith.subf %7, %10 : vector<1x256xf32>
    %12 = math.exp %11 : vector<1x256xf32>
    %cst_7 = arith.constant dense<0.000000e+00> : vector<1xf32>
    %13 = vector.multi_reduction <add>, %12, %cst_7 [1] : vector<1x256xf32> to vector<1xf32>
    %14 = vector.shape_cast %13 : vector<1xf32> to vector<1x1xf32>
    %15 = vector.broadcast %14 : vector<1x1xf32> to vector<1x256xf32>
    %16 = arith.divf %12, %15 : vector<1x256xf32>
    %cst_8 = arith.constant 9.99999993E-9 : f32
    %17 = vector.broadcast %cst_8 : f32 to vector<1x256xf32>
    %18 = arith.addf %16, %17 : vector<1x256xf32>
    %cst_9 = arith.constant 0.000000e+00 : f32
    %19 = vector.broadcast %cst_9 : f32 to vector<1x256xf32>
    %20 = arith.subf %19, %18 : vector<1x256xf32>
    %21 = math.log %18 : vector<1x256xf32>
    %22 = arith.mulf %20, %21 : vector<1x256xf32>
    %cst_10 = arith.constant 0.693147182 : f32
    %23 = vector.broadcast %cst_10 : f32 to vector<1x256xf32>
    %24 = arith.divf %22, %23 : vector<1x256xf32>
    %25 = tpu.iota {dimensions = array<i32: 1>} : vector<1x256xi32>
    %cst_11 = arith.constant 0.000000e+00 : f32
    %26 = vector.broadcast %cst_11 : f32 to vector<1x256xf32>
    %c5_i32 = arith.constant 5 : i32
    %27 = tpu.dynamic_rotate %24 by %c5_i32 dim 1 : vector<1x256xf32>, i32 -> vector<1x256xf32>
    %c-5_i32 = arith.constant -5 : i32
    %28 = vector.broadcast %c-5_i32 : i32 to vector<1x256xi32>
    %29 = arith.addi %25, %28 : vector<1x256xi32>
    %c0_i32 = arith.constant 0 : i32
    %30 = vector.broadcast %c0_i32 : i32 to vector<1x256xi32>
    %31 = arith.cmpi sge, %29, %30 : vector<1x256xi32>
    %c-5_i32_12 = arith.constant -5 : i32
    %32 = vector.broadcast %c-5_i32_12 : i32 to vector<1x256xi32>
    %33 = arith.addi %25, %32 : vector<1x256xi32>
    %c256_i32 = arith.constant 256 : i32
    %34 = vector.broadcast %c256_i32 : i32 to vector<1x256xi32>
    %35 = arith.cmpi slt, %33, %34 : vector<1x256xi32>
    %36 = arith.andi %31, %35 : vector<1x256xi1>
    %cst_13 = arith.constant 0.000000e+00 : f32
    %37 = vector.broadcast %cst_13 : f32 to vector<1x256xf32>
    %38 = arith.select %36, %27, %37 : vector<1x256xi1>, vector<1x256xf32>
    %cst_14 = arith.constant 0.00876415055 : f32
    %39 = vector.broadcast %cst_14 : f32 to vector<1x256xf32>
    %40 = arith.mulf %39, %38 : vector<1x256xf32>
    %41 = arith.addf %26, %40 : vector<1x256xf32>
    %c4_i32 = arith.constant 4 : i32
    %42 = tpu.dynamic_rotate %24 by %c4_i32 dim 1 : vector<1x256xf32>, i32 -> vector<1x256xf32>
    %c-4_i32 = arith.constant -4 : i32
    %43 = vector.broadcast %c-4_i32 : i32 to vector<1x256xi32>
    %44 = arith.addi %25, %43 : vector<1x256xi32>
    %c0_i32_15 = arith.constant 0 : i32
    %45 = vector.broadcast %c0_i32_15 : i32 to vector<1x256xi32>
    %46 = arith.cmpi sge, %44, %45 : vector<1x256xi32>
    %c-4_i32_16 = arith.constant -4 : i32
    %47 = vector.broadcast %c-4_i32_16 : i32 to vector<1x256xi32>
    %48 = arith.addi %25, %47 : vector<1x256xi32>
    %c256_i32_17 = arith.constant 256 : i32
    %49 = vector.broadcast %c256_i32_17 : i32 to vector<1x256xi32>
    %50 = arith.cmpi slt, %48, %49 : vector<1x256xi32>
    %51 = arith.andi %46, %50 : vector<1x256xi1>
    %cst_18 = arith.constant 0.000000e+00 : f32
    %52 = vector.broadcast %cst_18 : f32 to vector<1x256xf32>
    %53 = arith.select %51, %42, %52 : vector<1x256xi1>, vector<1x256xf32>
    %cst_19 = arith.constant 0.0269954838 : f32
    %54 = vector.broadcast %cst_19 : f32 to vector<1x256xf32>
    %55 = arith.mulf %54, %53 : vector<1x256xf32>
    %56 = arith.addf %41, %55 : vector<1x256xf32>
    %c3_i32 = arith.constant 3 : i32
    %57 = tpu.dynamic_rotate %24 by %c3_i32 dim 1 : vector<1x256xf32>, i32 -> vector<1x256xf32>
    %c-3_i32 = arith.constant -3 : i32
    %58 = vector.broadcast %c-3_i32 : i32 to vector<1x256xi32>
    %59 = arith.addi %25, %58 : vector<1x256xi32>
    %c0_i32_20 = arith.constant 0 : i32
    %60 = vector.broadcast %c0_i32_20 : i32 to vector<1x256xi32>
    %61 = arith.cmpi sge, %59, %60 : vector<1x256xi32>
    %c-3_i32_21 = arith.constant -3 : i32
    %62 = vector.broadcast %c-3_i32_21 : i32 to vector<1x256xi32>
    %63 = arith.addi %25, %62 : vector<1x256xi32>
    %c256_i32_22 = arith.constant 256 : i32
    %64 = vector.broadcast %c256_i32_22 : i32 to vector<1x256xi32>
    %65 = arith.cmpi slt, %63, %64 : vector<1x256xi32>
    %66 = arith.andi %61, %65 : vector<1x256xi1>
    %cst_23 = arith.constant 0.000000e+00 : f32
    %67 = vector.broadcast %cst_23 : f32 to vector<1x256xf32>
    %68 = arith.select %66, %57, %67 : vector<1x256xi1>, vector<1x256xf32>
    %cst_24 = arith.constant 6.475880e-02 : f32
    %69 = vector.broadcast %cst_24 : f32 to vector<1x256xf32>
    %70 = arith.mulf %69, %68 : vector<1x256xf32>
    %71 = arith.addf %56, %70 : vector<1x256xf32>
    %c2_i32 = arith.constant 2 : i32
    %72 = tpu.dynamic_rotate %24 by %c2_i32 dim 1 : vector<1x256xf32>, i32 -> vector<1x256xf32>
    %c-2_i32 = arith.constant -2 : i32
    %73 = vector.broadcast %c-2_i32 : i32 to vector<1x256xi32>
    %74 = arith.addi %25, %73 : vector<1x256xi32>
    %c0_i32_25 = arith.constant 0 : i32
    %75 = vector.broadcast %c0_i32_25 : i32 to vector<1x256xi32>
    %76 = arith.cmpi sge, %74, %75 : vector<1x256xi32>
    %c-2_i32_26 = arith.constant -2 : i32
    %77 = vector.broadcast %c-2_i32_26 : i32 to vector<1x256xi32>
    %78 = arith.addi %25, %77 : vector<1x256xi32>
    %c256_i32_27 = arith.constant 256 : i32
    %79 = vector.broadcast %c256_i32_27 : i32 to vector<1x256xi32>
    %80 = arith.cmpi slt, %78, %79 : vector<1x256xi32>
    %81 = arith.andi %76, %80 : vector<1x256xi1>
    %cst_28 = arith.constant 0.000000e+00 : f32
    %82 = vector.broadcast %cst_28 : f32 to vector<1x256xf32>
    %83 = arith.select %81, %72, %82 : vector<1x256xi1>, vector<1x256xf32>
    %cst_29 = arith.constant 0.120985359 : f32
    %84 = vector.broadcast %cst_29 : f32 to vector<1x256xf32>
    %85 = arith.mulf %84, %83 : vector<1x256xf32>
    %86 = arith.addf %71, %85 : vector<1x256xf32>
    %c1_i32 = arith.constant 1 : i32
    %87 = tpu.dynamic_rotate %24 by %c1_i32 dim 1 : vector<1x256xf32>, i32 -> vector<1x256xf32>
    %c-1_i32 = arith.constant -1 : i32
    %88 = vector.broadcast %c-1_i32 : i32 to vector<1x256xi32>
    %89 = arith.addi %25, %88 : vector<1x256xi32>
    %c0_i32_30 = arith.constant 0 : i32
    %90 = vector.broadcast %c0_i32_30 : i32 to vector<1x256xi32>
    %91 = arith.cmpi sge, %89, %90 : vector<1x256xi32>
    %c-1_i32_31 = arith.constant -1 : i32
    %92 = vector.broadcast %c-1_i32_31 : i32 to vector<1x256xi32>
    %93 = arith.addi %25, %92 : vector<1x256xi32>
    %c256_i32_32 = arith.constant 256 : i32
    %94 = vector.broadcast %c256_i32_32 : i32 to vector<1x256xi32>
    %95 = arith.cmpi slt, %93, %94 : vector<1x256xi32>
    %96 = arith.andi %91, %95 : vector<1x256xi1>
    %cst_33 = arith.constant 0.000000e+00 : f32
    %97 = vector.broadcast %cst_33 : f32 to vector<1x256xf32>
    %98 = arith.select %96, %87, %97 : vector<1x256xi1>, vector<1x256xf32>
    %cst_34 = arith.constant 0.176032662 : f32
    %99 = vector.broadcast %cst_34 : f32 to vector<1x256xf32>
    %100 = arith.mulf %99, %98 : vector<1x256xf32>
    %101 = arith.addf %86, %100 : vector<1x256xf32>
    %c0_i32_35 = arith.constant 0 : i32
    %102 = vector.broadcast %c0_i32_35 : i32 to vector<1x256xi32>
    %103 = arith.addi %25, %102 : vector<1x256xi32>
    %c0_i32_36 = arith.constant 0 : i32
    %104 = vector.broadcast %c0_i32_36 : i32 to vector<1x256xi32>
    %105 = arith.cmpi sge, %103, %104 : vector<1x256xi32>
    %c0_i32_37 = arith.constant 0 : i32
    %106 = vector.broadcast %c0_i32_37 : i32 to vector<1x256xi32>
    %107 = arith.addi %25, %106 : vector<1x256xi32>
    %c256_i32_38 = arith.constant 256 : i32
    %108 = vector.broadcast %c256_i32_38 : i32 to vector<1x256xi32>
    %109 = arith.cmpi slt, %107, %108 : vector<1x256xi32>
    %110 = arith.andi %105, %109 : vector<1x256xi1>
    %cst_39 = arith.constant 0.000000e+00 : f32
    %111 = vector.broadcast %cst_39 : f32 to vector<1x256xf32>
    %112 = arith.select %110, %24, %111 : vector<1x256xi1>, vector<1x256xf32>
    %cst_40 = arith.constant 0.199471146 : f32
    %113 = vector.broadcast %cst_40 : f32 to vector<1x256xf32>
    %114 = arith.mulf %113, %112 : vector<1x256xf32>
    %115 = arith.addf %101, %114 : vector<1x256xf32>
    %c255_i32 = arith.constant 255 : i32
    %116 = tpu.dynamic_rotate %24 by %c255_i32 dim 1 : vector<1x256xf32>, i32 -> vector<1x256xf32>
    %c1_i32_41 = arith.constant 1 : i32
    %117 = vector.broadcast %c1_i32_41 : i32 to vector<1x256xi32>
    %118 = arith.addi %25, %117 : vector<1x256xi32>
    %c0_i32_42 = arith.constant 0 : i32
    %119 = vector.broadcast %c0_i32_42 : i32 to vector<1x256xi32>
    %120 = arith.cmpi sge, %118, %119 : vector<1x256xi32>
    %c1_i32_43 = arith.constant 1 : i32
    %121 = vector.broadcast %c1_i32_43 : i32 to vector<1x256xi32>
    %122 = arith.addi %25, %121 : vector<1x256xi32>
    %c256_i32_44 = arith.constant 256 : i32
    %123 = vector.broadcast %c256_i32_44 : i32 to vector<1x256xi32>
    %124 = arith.cmpi slt, %122, %123 : vector<1x256xi32>
    %125 = arith.andi %120, %124 : vector<1x256xi1>
    %cst_45 = arith.constant 0.000000e+00 : f32
    %126 = vector.broadcast %cst_45 : f32 to vector<1x256xf32>
    %127 = arith.select %125, %116, %126 : vector<1x256xi1>, vector<1x256xf32>
    %cst_46 = arith.constant 0.176032662 : f32
    %128 = vector.broadcast %cst_46 : f32 to vector<1x256xf32>
    %129 = arith.mulf %128, %127 : vector<1x256xf32>
    %130 = arith.addf %115, %129 : vector<1x256xf32>
    %c254_i32 = arith.constant 254 : i32
    %131 = tpu.dynamic_rotate %24 by %c254_i32 dim 1 : vector<1x256xf32>, i32 -> vector<1x256xf32>
    %c2_i32_47 = arith.constant 2 : i32
    %132 = vector.broadcast %c2_i32_47 : i32 to vector<1x256xi32>
    %133 = arith.addi %25, %132 : vector<1x256xi32>
    %c0_i32_48 = arith.constant 0 : i32
    %134 = vector.broadcast %c0_i32_48 : i32 to vector<1x256xi32>
    %135 = arith.cmpi sge, %133, %134 : vector<1x256xi32>
    %c2_i32_49 = arith.constant 2 : i32
    %136 = vector.broadcast %c2_i32_49 : i32 to vector<1x256xi32>
    %137 = arith.addi %25, %136 : vector<1x256xi32>
    %c256_i32_50 = arith.constant 256 : i32
    %138 = vector.broadcast %c256_i32_50 : i32 to vector<1x256xi32>
    %139 = arith.cmpi slt, %137, %138 : vector<1x256xi32>
    %140 = arith.andi %135, %139 : vector<1x256xi1>
    %cst_51 = arith.constant 0.000000e+00 : f32
    %141 = vector.broadcast %cst_51 : f32 to vector<1x256xf32>
    %142 = arith.select %140, %131, %141 : vector<1x256xi1>, vector<1x256xf32>
    %cst_52 = arith.constant 0.120985359 : f32
    %143 = vector.broadcast %cst_52 : f32 to vector<1x256xf32>
    %144 = arith.mulf %143, %142 : vector<1x256xf32>
    %145 = arith.addf %130, %144 : vector<1x256xf32>
    %c253_i32 = arith.constant 253 : i32
    %146 = tpu.dynamic_rotate %24 by %c253_i32 dim 1 : vector<1x256xf32>, i32 -> vector<1x256xf32>
    %c3_i32_53 = arith.constant 3 : i32
    %147 = vector.broadcast %c3_i32_53 : i32 to vector<1x256xi32>
    %148 = arith.addi %25, %147 : vector<1x256xi32>
    %c0_i32_54 = arith.constant 0 : i32
    %149 = vector.broadcast %c0_i32_54 : i32 to vector<1x256xi32>
    %150 = arith.cmpi sge, %148, %149 : vector<1x256xi32>
    %c3_i32_55 = arith.constant 3 : i32
    %151 = vector.broadcast %c3_i32_55 : i32 to vector<1x256xi32>
    %152 = arith.addi %25, %151 : vector<1x256xi32>
    %c256_i32_56 = arith.constant 256 : i32
    %153 = vector.broadcast %c256_i32_56 : i32 to vector<1x256xi32>
    %154 = arith.cmpi slt, %152, %153 : vector<1x256xi32>
    %155 = arith.andi %150, %154 : vector<1x256xi1>
    %cst_57 = arith.constant 0.000000e+00 : f32
    %156 = vector.broadcast %cst_57 : f32 to vector<1x256xf32>
    %157 = arith.select %155, %146, %156 : vector<1x256xi1>, vector<1x256xf32>
    %cst_58 = arith.constant 6.475880e-02 : f32
    %158 = vector.broadcast %cst_58 : f32 to vector<1x256xf32>
    %159 = arith.mulf %158, %157 : vector<1x256xf32>
    %160 = arith.addf %145, %159 : vector<1x256xf32>
    %c252_i32 = arith.constant 252 : i32
    %161 = tpu.dynamic_rotate %24 by %c252_i32 dim 1 : vector<1x256xf32>, i32 -> vector<1x256xf32>
    %c4_i32_59 = arith.constant 4 : i32
    %162 = vector.broadcast %c4_i32_59 : i32 to vector<1x256xi32>
    %163 = arith.addi %25, %162 : vector<1x256xi32>
    %c0_i32_60 = arith.constant 0 : i32
    %164 = vector.broadcast %c0_i32_60 : i32 to vector<1x256xi32>
    %165 = arith.cmpi sge, %163, %164 : vector<1x256xi32>
    %c4_i32_61 = arith.constant 4 : i32
    %166 = vector.broadcast %c4_i32_61 : i32 to vector<1x256xi32>
    %167 = arith.addi %25, %166 : vector<1x256xi32>
    %c256_i32_62 = arith.constant 256 : i32
    %168 = vector.broadcast %c256_i32_62 : i32 to vector<1x256xi32>
    %169 = arith.cmpi slt, %167, %168 : vector<1x256xi32>
    %170 = arith.andi %165, %169 : vector<1x256xi1>
    %cst_63 = arith.constant 0.000000e+00 : f32
    %171 = vector.broadcast %cst_63 : f32 to vector<1x256xf32>
    %172 = arith.select %170, %161, %171 : vector<1x256xi1>, vector<1x256xf32>
    %cst_64 = arith.constant 0.0269954838 : f32
    %173 = vector.broadcast %cst_64 : f32 to vector<1x256xf32>
    %174 = arith.mulf %173, %172 : vector<1x256xf32>
    %175 = arith.addf %160, %174 : vector<1x256xf32>
    %c251_i32 = arith.constant 251 : i32
    %176 = tpu.dynamic_rotate %24 by %c251_i32 dim 1 : vector<1x256xf32>, i32 -> vector<1x256xf32>
    %c5_i32_65 = arith.constant 5 : i32
    %177 = vector.broadcast %c5_i32_65 : i32 to vector<1x256xi32>
    %178 = arith.addi %25, %177 : vector<1x256xi32>
    %c0_i32_66 = arith.constant 0 : i32
    %179 = vector.broadcast %c0_i32_66 : i32 to vector<1x256xi32>
    %180 = arith.cmpi sge, %178, %179 : vector<1x256xi32>
    %c5_i32_67 = arith.constant 5 : i32
    %181 = vector.broadcast %c5_i32_67 : i32 to vector<1x256xi32>
    %182 = arith.addi %25, %181 : vector<1x256xi32>
    %c256_i32_68 = arith.constant 256 : i32
    %183 = vector.broadcast %c256_i32_68 : i32 to vector<1x256xi32>
    %184 = arith.cmpi slt, %182, %183 : vector<1x256xi32>
    %185 = arith.andi %180, %184 : vector<1x256xi1>
    %cst_69 = arith.constant 0.000000e+00 : f32
    %186 = vector.broadcast %cst_69 : f32 to vector<1x256xf32>
    %187 = arith.select %185, %176, %186 : vector<1x256xi1>, vector<1x256xf32>
    %cst_70 = arith.constant 0.00876415055 : f32
    %188 = vector.broadcast %cst_70 : f32 to vector<1x256xf32>
    %189 = arith.mulf %188, %187 : vector<1x256xf32>
    %190 = arith.addf %175, %189 : vector<1x256xf32>
    %191 = tpu.iota {dimensions = array<i32: 1>} : vector<1x256xi32>
    %cst_71 = arith.constant 0.000000e+00 : f32
    %192 = vector.broadcast %cst_71 : f32 to vector<1x256xf32>
    %c1_i32_72 = arith.constant 1 : i32
    %193 = tpu.dynamic_rotate %190 by %c1_i32_72 dim 1 : vector<1x256xf32>, i32 -> vector<1x256xf32>
    %c-1_i32_73 = arith.constant -1 : i32
    %194 = vector.broadcast %c-1_i32_73 : i32 to vector<1x256xi32>
    %195 = arith.addi %191, %194 : vector<1x256xi32>
    %c0_i32_74 = arith.constant 0 : i32
    %196 = vector.broadcast %c0_i32_74 : i32 to vector<1x256xi32>
    %197 = arith.cmpi sge, %195, %196 : vector<1x256xi32>
    %c-1_i32_75 = arith.constant -1 : i32
    %198 = vector.broadcast %c-1_i32_75 : i32 to vector<1x256xi32>
    %199 = arith.addi %191, %198 : vector<1x256xi32>
    %c256_i32_76 = arith.constant 256 : i32
    %200 = vector.broadcast %c256_i32_76 : i32 to vector<1x256xi32>
    %201 = arith.cmpi slt, %199, %200 : vector<1x256xi32>
    %202 = arith.andi %197, %201 : vector<1x256xi1>
    %cst_77 = arith.constant 0.000000e+00 : f32
    %203 = vector.broadcast %cst_77 : f32 to vector<1x256xf32>
    %204 = arith.select %202, %193, %203 : vector<1x256xi1>, vector<1x256xf32>
    %cst_78 = arith.constant -1.000000e+00 : f32
    %205 = vector.broadcast %cst_78 : f32 to vector<1x256xf32>
    %206 = arith.mulf %205, %204 : vector<1x256xf32>
    %207 = arith.addf %192, %206 : vector<1x256xf32>
    %c0_i32_79 = arith.constant 0 : i32
    %208 = vector.broadcast %c0_i32_79 : i32 to vector<1x256xi32>
    %209 = arith.addi %191, %208 : vector<1x256xi32>
    %c0_i32_80 = arith.constant 0 : i32
    %210 = vector.broadcast %c0_i32_80 : i32 to vector<1x256xi32>
    %211 = arith.cmpi sge, %209, %210 : vector<1x256xi32>
    %c0_i32_81 = arith.constant 0 : i32
    %212 = vector.broadcast %c0_i32_81 : i32 to vector<1x256xi32>
    %213 = arith.addi %191, %212 : vector<1x256xi32>
    %c256_i32_82 = arith.constant 256 : i32
    %214 = vector.broadcast %c256_i32_82 : i32 to vector<1x256xi32>
    %215 = arith.cmpi slt, %213, %214 : vector<1x256xi32>
    %216 = arith.andi %211, %215 : vector<1x256xi1>
    %cst_83 = arith.constant 0.000000e+00 : f32
    %217 = vector.broadcast %cst_83 : f32 to vector<1x256xf32>
    %218 = arith.select %216, %190, %217 : vector<1x256xi1>, vector<1x256xf32>
    %cst_84 = arith.constant 2.000000e+00 : f32
    %219 = vector.broadcast %cst_84 : f32 to vector<1x256xf32>
    %220 = arith.mulf %219, %218 : vector<1x256xf32>
    %221 = arith.addf %207, %220 : vector<1x256xf32>
    %c255_i32_85 = arith.constant 255 : i32
    %222 = tpu.dynamic_rotate %190 by %c255_i32_85 dim 1 : vector<1x256xf32>, i32 -> vector<1x256xf32>
    %c1_i32_86 = arith.constant 1 : i32
    %223 = vector.broadcast %c1_i32_86 : i32 to vector<1x256xi32>
    %224 = arith.addi %191, %223 : vector<1x256xi32>
    %c0_i32_87 = arith.constant 0 : i32
    %225 = vector.broadcast %c0_i32_87 : i32 to vector<1x256xi32>
    %226 = arith.cmpi sge, %224, %225 : vector<1x256xi32>
    %c1_i32_88 = arith.constant 1 : i32
    %227 = vector.broadcast %c1_i32_88 : i32 to vector<1x256xi32>
    %228 = arith.addi %191, %227 : vector<1x256xi32>
    %c256_i32_89 = arith.constant 256 : i32
    %229 = vector.broadcast %c256_i32_89 : i32 to vector<1x256xi32>
    %230 = arith.cmpi slt, %228, %229 : vector<1x256xi32>
    %231 = arith.andi %226, %230 : vector<1x256xi1>
    %cst_90 = arith.constant 0.000000e+00 : f32
    %232 = vector.broadcast %cst_90 : f32 to vector<1x256xf32>
    %233 = arith.select %231, %222, %232 : vector<1x256xi1>, vector<1x256xf32>
    %cst_91 = arith.constant -1.000000e+00 : f32
    %234 = vector.broadcast %cst_91 : f32 to vector<1x256xf32>
    %235 = arith.mulf %234, %233 : vector<1x256xf32>
    %236 = arith.addf %221, %235 : vector<1x256xf32>
    %cst_92 = arith.constant 0.000000e+00 : f32
    %237 = vector.broadcast %cst_92 : f32 to vector<1x256xf32>
    %238 = arith.cmpf ogt, %236, %237 : vector<1x256xf32>
    %239 = arith.extui %238 : vector<1x256xi1> to vector<1x256xi32>
    %240 = arith.sitofp %239 : vector<1x256xi32> to vector<1x256xf32>
    %c0_93 = arith.constant 0 : index
    %c0_94 = arith.constant 0 : index
    %c0_95 = arith.constant 0 : index
    %241 = vector.load %arg4[%c0_93, %c0_94, %c0_95] : memref<1x1x256xf32, #tpu.memory_space<vmem>>, vector<1x1x256xf32>
    %242 = vector.shape_cast %241 : vector<1x1x256xf32> to vector<1x256xf32>
    %243 = vector.shape_cast %190 : vector<1x256xf32> to vector<1x1x256xf32>
    tpu.vector_store %arg4[%c0_93, %c0_94, %c0_95], %243 {strides = array<i32>} : memref<1x1x256xf32, #tpu.memory_space<vmem>>, vector<1x1x256xf32>,
    %244 = tpu.iota {dimensions = array<i32: 1>} : vector<1x256xi32>
    %c1_i32_96 = arith.constant 1 : i32
    %245 = tpu.dynamic_rotate %240 by %c1_i32_96 dim 1 : vector<1x256xf32>, i32 -> vector<1x256xf32>
    %c1_i32_97 = arith.constant 1 : i32
    %246 = vector.broadcast %c1_i32_97 : i32 to vector<1x256xi32>
    %247 = arith.cmpi sge, %244, %246 : vector<1x256xi32>
    %248 = arith.subf %240, %245 : vector<1x256xf32>
    %249 = math.absf %248 : vector<1x256xf32>
    %cst_98 = arith.constant 0.000000e+00 : f32
    %250 = vector.broadcast %cst_98 : f32 to vector<1x256xf32>
    %251 = arith.select %247, %249, %250 : vector<1x256xi1>, vector<1x256xf32>
    %cst_99 = arith.constant dense<0.000000e+00> : vector<1xf32>
    %252 = vector.multi_reduction <add>, %251, %cst_99 [1] : vector<1x256xf32> to vector<1xf32>
    %253 = vector.shape_cast %252 : vector<1xf32> to vector<1x1xf32>
    %c0_100 = arith.constant 0 : index
    %c0_101 = arith.constant 0 : index
    %c0_102 = arith.constant 0 : index
    %254 = vector.load %arg5[%c0_100, %c0_101, %c0_102] : memref<1x1x1xf32, #tpu.memory_space<vmem>>, vector<1x1x1xf32>
    %255 = vector.shape_cast %254 : vector<1x1x1xf32> to vector<1x1xf32>
    %256 = vector.shape_cast %253 : vector<1x1xf32> to vector<1x1x1xf32>
    tpu.vector_store %arg5[%c0_100, %c0_101, %c0_102], %256 {strides = array<i32>} : memref<1x1x1xf32, #tpu.memory_space<vmem>>, vector<1x1x1xf32>,
    return
  }
  func.func @transform_0(%arg0: i32) -> (i32, i32, i32) {
    %c0_i32 = arith.constant 0 : i32
    %c0_i32_0 = arith.constant 0 : i32
    %c0_i32_1 = arith.constant 0 : i32
    return %arg0, %c0_i32, %c0_i32_0 : i32, i32, i32
  }
  func.func @transform_1(%arg0: i32) -> (i32, i32) {
    %c0_i32 = arith.constant 0 : i32
    %c0_i32_0 = arith.constant 0 : i32
    %c0_i32_1 = arith.constant 0 : i32
    return %c0_i32, %c0_i32_0 : i32, i32
  }
  func.func @transform_2(%arg0: i32) -> (i32, i32) {
    %c0_i32 = arith.constant 0 : i32
    %c0_i32_0 = arith.constant 0 : i32
    %c0_i32_1 = arith.constant 0 : i32
    return %c0_i32, %c0_i32_0 : i32, i32
  }
  func.func @transform_3(%arg0: i32) -> (i32, i32, i32) {
    %c0_i32 = arith.constant 0 : i32
    %c0_i32_0 = arith.constant 0 : i32
    %c0_i32_1 = arith.constant 0 : i32
    return %arg0, %c0_i32, %c0_i32_0 : i32, i32, i32
  }
  func.func @transform_4(%arg0: i32) -> (i32, i32, i32) {
    %c0_i32 = arith.constant 0 : i32
    %c0_i32_0 = arith.constant 0 : i32
    %c0_i32_1 = arith.constant 0 : i32
    return %arg0, %c0_i32, %c0_i32_0 : i32, i32, i32
  }
}

</mosaic_0001>

<llo_original>
// kernel: tpu_custom_call.1
$region0: #{tpu_custom_call.1}
  #allocation0 [shape = 'u32[]', space=smem, size = 0x4, offset = 0x4, fixed_abs, tag = 'smem constant byte address 0x4 - core index']
  #allocation1 [shape = 'u32[144,128]{1,0:T(1,128)}', space=vmem, size = 0x12000, scoped, tag = 'internal scratch']
  #allocation2 [shape = 'f32[1,1]{1,0:T(1,128)S(6)}', space=smem, size = 0x200, scoped, tag = 'scoped memory for tpu_custom_call.1']
  %s0 = inlined_call_operand.vmem [shape: f32[2,256,32], index: 0, kind: input, shape index: {}]
  %s1 = inlined_call_operand.vmem [shape: f32[8,32], index: 1, kind: input, shape index: {}]
  %s2 = inlined_call_operand.<no memory space> [shape: f32[1,1], index: 2, kind: input, shape index: {}]
  %s3 = inlined_call_operand.hbm [shape: f32[2,1,256], index: 3, kind: output, shape index: {0}]
  %s4 = inlined_call_operand.vmem [shape: f32[2,1,1], index: 4, kind: output, shape index: {1}]
  %5 = xla_tuple %s3, %s4
  %s6 = sld [smem:[#allocation0]]
  $region53: #{tpu_custom_call.1} parent=0
    _
  %s8 = ssub.s32 1, %s6
  %s9 = scalar_select 0, %s8, %s6
  %10 = sst [smem:[#allocation2]] %s2
  $region1: #{tpu_custom_call.1} parent=0
    #allocation3 [shape = 'u8[2048]{0}', space=vmem, size = 0x800, scoped, tag = 'output window, operand 0']
    #allocation4 [shape = 's32[2]{0}', space=sflag, size = 0x8, scoped, tag = 'scoped memory for tpu_custom_call.1']
    %11 = vsyncpa [#allocation4], 0
    %s12 = scalar_lea.sflag [#allocation4], 1
    %13 = vsyncpa %s12, 0
    loop: start=0, step=1, limit=4
    $region2: #{tpu_custom_call.1} parent=1 // loop_pre_header
      _
    $region3: #{tpu_custom_call.1} parent=1 // loop_header
      %s15 = sphi 0, %s19
      %p16 = scmp.ge.s32.totalorder %s15, 4
      %s25 = sphi 0, %s27
      %s28 = sphi 0, %s25
      %s29 = sphi 0, %s28
      %s45 = sphi 0, %s29
      %s49 = sphi 0, %s49
      %s51 = sphi 0, %s49
      %s52 = sphi 0, %s51
      %s66 = sphi 0, %s52
      %s70 = sphi 0, %s70
      %s72 = sphi 0, %s70
      %s73 = sphi 0, %s72
      %s87 = sphi 0, %s73
      %s93 = sphi 0, %s95
      %s96 = sphi 0, %s93
      %s97 = sphi 0, %s96
      %s113 = sphi 0, %s97
      %s119 = sphi 0, %s121
      %s122 = sphi 0, %s119
      %s123 = sphi 0, %s122
      %s139 = sphi 0, %s123
    $region4: #{tpu_custom_call.1} parent=1 // loop_header_branch
      %18 = sbr.rel (%p16) target = $region8
    $region5: #{tpu_custom_call.1} parent=1 // loop_body
      %s20 = ssub.s32 %s15, 1
      %s21 = ssub.s32 %s15, 2
      %s22 = sadd.s32 %s15, 1
      %s23 = ssub.s32 %s15, %s22
      %p24 = scmp.eq.s32.totalorder %s23, 0
      %s26 = sadd.s32 %s25, 1
      %s27 = scalar_select %p24, %s25, %s26
      %p30 = pneg %p24
      %p31 = scmp.eq.s32.totalorder %s15, 1
      %p32 = por %p30, %p31
      %p33 = scmp.ne.s32.totalorder %s25, %s28
      %p34 = scmp.eq.s32.totalorder %s15, 0
      %p35 = por %p33, %p34
      %p36 = scmp.ne.s32.totalorder %s25, %s28
      %p37 = scmp.eq.s32.totalorder %s20, 1
      %p38 = por %p36, %p37
      %p39 = scmp.ne.s32.totalorder %s28, %s29
      %p40 = scmp.eq.s32.totalorder %s20, 0
      %p41 = por %p39, %p40
      %p42 = scmp.ne.s32.totalorder %s28, %s29
      %p43 = scmp.eq.s32.totalorder %s21, 1
      %p44 = por %p42, %p43
      %p46 = scmp.ne.s32.totalorder %s29, %s45
      %p47 = scmp.eq.s32.totalorder %s21, 0
      %p48 = por %p46, %p47
      %s50 = sadd.s32 %s49, 1
      %p53 = scmp.eq.s32.totalorder %s15, 1
      %p54 = scmp.ne.s32.totalorder %s49, %s51
      %p55 = scmp.eq.s32.totalorder %s15, 0
      %p56 = por %p54, %p55
      %p57 = scmp.ne.s32.totalorder %s49, %s51
      %p58 = scmp.eq.s32.totalorder %s20, 1
      %p59 = por %p57, %p58
      %p60 = scmp.ne.s32.totalorder %s51, %s52
      %p61 = scmp.eq.s32.totalorder %s20, 0
      %p62 = por %p60, %p61
      %p63 = scmp.ne.s32.totalorder %s51, %s52
      %p64 = scmp.eq.s32.totalorder %s21, 1
      %p65 = por %p63, %p64
      %p67 = scmp.ne.s32.totalorder %s52, %s66
      %p68 = scmp.eq.s32.totalorder %s21, 0
      %p69 = por %p67, %p68
      %s71 = sadd.s32 %s70, 1
      %p74 = scmp.eq.s32.totalorder %s15, 1
      %p75 = scmp.ne.s32.totalorder %s70, %s72
      %p76 = scmp.eq.s32.totalorder %s15, 0
      %p77 = por %p75, %p76
      %p78 = scmp.ne.s32.totalorder %s70, %s72
      %p79 = scmp.eq.s32.totalorder %s20, 1
      %p80 = por %p78, %p79
      %p81 = scmp.ne.s32.totalorder %s72, %s73
      %p82 = scmp.eq.s32.totalorder %s20, 0
      %p83 = por %p81, %p82
      %p84 = scmp.ne.s32.totalorder %s72, %s73
      %p85 = scmp.eq.s32.totalorder %s21, 1
      %p86 = por %p84, %p85
      %p88 = scmp.ne.s32.totalorder %s73, %s87
      %p89 = scmp.eq.s32.totalorder %s21, 0
      %p90 = por %p88, %p89
      %s91 = ssub.s32 %s15, %s22
      %p92 = scmp.eq.s32.totalorder %s91, 0
      %s94 = sadd.s32 %s93, 1
      %s95 = scalar_select %p92, %s93, %s94
      %p98 = pneg %p92
      %p99 = scmp.eq.s32.totalorder %s15, 1
      %p100 = por %p98, %p99
      %p101 = scmp.ne.s32.totalorder %s93, %s96
      %p102 = scmp.eq.s32.totalorder %s15, 0
      %p103 = por %p101, %p102
      %p104 = scmp.ne.s32.totalorder %s93, %s96
      %p105 = scmp.eq.s32.totalorder %s20, 1
      %p106 = por %p104, %p105
      %p107 = scmp.ne.s32.totalorder %s96, %s97
      %p108 = scmp.eq.s32.totalorder %s20, 0
      %p109 = por %p107, %p108
      %p110 = scmp.ne.s32.totalorder %s96, %s97
      %p111 = scmp.eq.s32.totalorder %s21, 1
      %p112 = por %p110, %p111
      %p114 = scmp.ne.s32.totalorder %s97, %s113
      %p115 = scmp.eq.s32.totalorder %s21, 0
      %p116 = por %p114, %p115
      %s117 = ssub.s32 %s15, %s22
      %p118 = scmp.eq.s32.totalorder %s117, 0
      %s120 = sadd.s32 %s119, 1
      %s121 = scalar_select %p118, %s119, %s120
      %p124 = pneg %p118
      %p125 = scmp.eq.s32.totalorder %s15, 1
      %p126 = por %p124, %p125
      %p127 = scmp.ne.s32.totalorder %s119, %s122
      %p128 = scmp.eq.s32.totalorder %s15, 0
      %p129 = por %p127, %p128
      %p130 = scmp.ne.s32.totalorder %s119, %s122
      %p131 = scmp.eq.s32.totalorder %s20, 1
      %p132 = por %p130, %p131
      %p133 = scmp.ne.s32.totalorder %s122, %s123
      %p134 = scmp.eq.s32.totalorder %s20, 0
      %p135 = por %p133, %p134
      %p136 = scmp.ne.s32.totalorder %s122, %s123
      %p137 = scmp.eq.s32.totalorder %s21, 1
      %p138 = por %p136, %p137
      %p140 = scmp.ne.s32.totalorder %s123, %s139
      %p141 = scmp.eq.s32.totalorder %s21, 0
      %p142 = por %p140, %p141
      %p143 = scmp.le.s32.totalorder 1, %s15
      %p144 = scmp.lt.s32.totalorder %s15, 3
      %p145 = pnand %p143, %p144
      %p146 = pneg %p145
      // Predicated region
      $region9: #{tpu_custom_call.1} parent=5 // pred_check
        _
      $region10: #{tpu_custom_call.1} parent=5 // pred_check_branch
        %148 = sbr.rel (%p145) target = $region12
      $region11: #{tpu_custom_call.1} parent=5 // pred_region
        %s149 = ssub.s32 %s15, 1
        // Predicated region
        $region13: #{tpu_custom_call.1} parent=11 // pred_check
          %p150 = pneg %p62
        $region14: #{tpu_custom_call.1} parent=11 // pred_check_branch
          %152 = sbr.rel (%p150) target = $region16
        $region15: #{tpu_custom_call.1} parent=11 // pred_region
          _
        $region16: #{tpu_custom_call.1} parent=11 // pred_fallthru
          _
        // Predicated region
        $region17: #{tpu_custom_call.1} parent=11 // pred_check
          %p153 = pneg %p83
        $region18: #{tpu_custom_call.1} parent=11 // pred_check_branch
          %155 = sbr.rel (%p153) target = $region20
        $region19: #{tpu_custom_call.1} parent=11 // pred_region
          _
        $region20: #{tpu_custom_call.1} parent=11 // pred_fallthru
          _
      $region12: #{tpu_custom_call.1} parent=5 // pred_fallthru
        _
      %p156 = scmp.lt.s32.totalorder %s15, 2
      // Predicated region
      $region21: #{tpu_custom_call.1} parent=5 // pred_check
        %p157 = pneg %p156
      $region22: #{tpu_custom_call.1} parent=5 // pred_check_branch
        %159 = sbr.rel (%p157) target = $region24
      $region23: #{tpu_custom_call.1} parent=5 // pred_region
        // Predicated region
        $region25: #{tpu_custom_call.1} parent=23 // pred_check
          %p160 = pneg %p35
        $region26: #{tpu_custom_call.1} parent=23 // pred_check_branch
          %162 = sbr.rel (%p160) target = $region28
        $region27: #{tpu_custom_call.1} parent=23 // pred_region
          %p163 = scmp.lt.s32.totalorder %s15, 1
          %s164 = scalar_select %p163, %s15, 1
          %s165 = smul.addr %s164, 32
          %s166 = smul.addr %s165, 8
          %s167 = scalar_lea.vmem %s0, %s166
        $region28: #{tpu_custom_call.1} parent=23 // pred_fallthru
          _
      $region24: #{tpu_custom_call.1} parent=5 // pred_fallthru
        _
      %p168 = scmp.le.s32.totalorder 1, %s15
      %p169 = scmp.lt.s32.totalorder %s15, 3
      %p170 = pnand %p168, %p169
      %p171 = pneg %p170
      // Predicated region
      $region29: #{tpu_custom_call.1} parent=5 // pred_check
        _
      $region30: #{tpu_custom_call.1} parent=5 // pred_check_branch
        %173 = sbr.rel (%p170) target = $region32
      $region31: #{tpu_custom_call.1} parent=5 // pred_region
        %s174 = ssub.s32 %s15, 1
        %p175 = scmp.lt.s32.totalorder %s20, 1
        %s176 = scalar_select %p175, %s20, 1
        %s177 = smul.addr %s176, 32
        %s178 = smul.addr %s177, 8
        %s179 = scalar_lea.vmem %s0, %s178
        %p180 = pneg %p41
        %p181 = pneg %p38
        %p182 = pneg %p62
        %p183 = pneg %p59
        %p184 = pneg %p83
        %p185 = pneg %p80
        %p186 = pneg %p109
        %p187 = pneg %p106
        %s188 = sand.u32 %s96, 1
        %s189 = scalar_lea.sflag [#allocation4], %s188
        %s190 = sand.u32 %s96, 1
        %s191 = smul.addr %s190, 2
        %s192 = scalar_lea.vmem [#allocation3], %s191
        %p193 = pneg %p135
        %p194 = pneg %p132
        %p195 = scmp.lt.s32.totalorder %s20, 1
        %s196 = scalar_select %p195, %s20, 1
        %s197 = scalar_lea.vmem %s4, %s196
        %p198 = scmp.lt.s32.totalorder %s20, 1
        %s199 = scalar_select %p198, %s20, 1
        %s200 = smul.addr %s199, 32
        %s201 = smul.addr %s200, 8
        %s202 = scalar_lea.vmem %s0, %s201
        %p203 = scmp.lt.s32.totalorder %s20, 1
        %s204 = scalar_select %p203, %s20, 1
        %s205 = scalar_lea.vmem %s4, %s204
        %v206 = vld [vmem:[%s202] sm:$0xff]
        %v207 = vld [vmem:[%s202 + $0x8] sm:$0xff]
        %v208 = vld [vmem:[%s202 + $0x10] sm:$0xff]
        %v209 = vld [vmem:[%s202 + $0x18] sm:$0xff]
        %v210 = vld [vmem:[%s202 + $0x20] sm:$0xff]
        %v211 = vld [vmem:[%s202 + $0x28] sm:$0xff]
        %v212 = vld [vmem:[%s202 + $0x30] sm:$0xff]
        %v213 = vld [vmem:[%s202 + $0x38] sm:$0xff]
        %v214 = vld [vmem:[%s202 + $0x40] sm:$0xff]
        %v215 = vld [vmem:[%s202 + $0x48] sm:$0xff]
        %v216 = vld [vmem:[%s202 + $0x50] sm:$0xff]
        %v217 = vld [vmem:[%s202 + $0x58] sm:$0xff]
        %v218 = vld [vmem:[%s202 + $0x60] sm:$0xff]
        %v219 = vld [vmem:[%s202 + $0x68] sm:$0xff]
        %v220 = vld [vmem:[%s202 + $0x70] sm:$0xff]
        %v221 = vld [vmem:[%s202 + $0x78] sm:$0xff]
        %v222 = vld [vmem:[%s202 + $0x80] sm:$0xff]
        %v223 = vld [vmem:[%s202 + $0x88] sm:$0xff]
        %v224 = vld [vmem:[%s202 + $0x90] sm:$0xff]
        %v225 = vld [vmem:[%s202 + $0x98] sm:$0xff]
        %v226 = vld [vmem:[%s202 + $0xa0] sm:$0xff]
        %v227 = vld [vmem:[%s202 + $0xa8] sm:$0xff]
        %v228 = vld [vmem:[%s202 + $0xb0] sm:$0xff]
        %v229 = vld [vmem:[%s202 + $0xb8] sm:$0xff]
        %v230 = vld [vmem:[%s202 + $0xc0] sm:$0xff]
        %v231 = vld [vmem:[%s202 + $0xc8] sm:$0xff]
        %v232 = vld [vmem:[%s202 + $0xd0] sm:$0xff]
        %v233 = vld [vmem:[%s202 + $0xd8] sm:$0xff]
        %v234 = vld [vmem:[%s202 + $0xe0] sm:$0xff]
        %v235 = vld [vmem:[%s202 + $0xe8] sm:$0xff]
        %v236 = vld [vmem:[%s202 + $0xf0] sm:$0xff]
        %v237 = vld [vmem:[%s202 + $0xf8] sm:$0xff]
        %v238 = vld [vmem:[%s1] sm:$0xff]
        %vm239 = vcmask 261120
        %v241 = vsel %vm239, %v238, 0
        %v244 = vsel %vm239, %v206, 0
        %v247 = vsel %vm239, %v207, 0
        %v250 = vsel %vm239, %v208, 0
        %v253 = vsel %vm239, %v209, 0
        %v256 = vsel %vm239, %v210, 0
        %v259 = vsel %vm239, %v211, 0
        %v262 = vsel %vm239, %v212, 0
        %v265 = vsel %vm239, %v213, 0
        %v268 = vsel %vm239, %v214, 0
        %v271 = vsel %vm239, %v215, 0
        %v274 = vsel %vm239, %v216, 0
        %v277 = vsel %vm239, %v217, 0
        %v280 = vsel %vm239, %v218, 0
        %v283 = vsel %vm239, %v219, 0
        %v286 = vsel %vm239, %v220, 0
        %v289 = vsel %vm239, %v221, 0
        %v292 = vsel %vm239, %v222, 0
        %v295 = vsel %vm239, %v223, 0
        %v298 = vsel %vm239, %v224, 0
        %v301 = vsel %vm239, %v225, 0
        %v304 = vsel %vm239, %v226, 0
        %v307 = vsel %vm239, %v227, 0
        %v310 = vsel %vm239, %v228, 0
        %v313 = vsel %vm239, %v229, 0
        %v316 = vsel %vm239, %v230, 0
        %v319 = vsel %vm239, %v231, 0
        %v322 = vsel %vm239, %v232, 0
        %v325 = vsel %vm239, %v233, 0
        %v328 = vsel %vm239, %v234, 0
        %v331 = vsel %vm239, %v235, 0
        %v334 = vsel %vm239, %v236, 0
        %v337 = vsel %vm239, %v237, 0
        %339 = vmatprep.subr.mxu0 0.0
        %340 = vmatpush1.xpose.msra.mxu0 %v244
        %341 = vmatprep.subr.mxu0 0.0
        %342 = vmatpush1.xpose.msra.mxu0 %v247
        %343 = vmatprep.subr.mxu0 0.0
        %344 = vmatpush1.xpose.msra.mxu0 %v250
        %345 = vmatprep.subr.mxu0 0.0
        %346 = vmatpush1.xpose.msra.mxu0 %v253
        %347 = vmatprep.subr.mxu0 0.0
        %348 = vmatpush1.xpose.msra.mxu0 %v256
        %349 = vmatprep.subr.mxu0 0.0
        %350 = vmatpush1.xpose.msra.mxu0 %v259
        %351 = vmatprep.subr.mxu0 0.0
        %352 = vmatpush1.xpose.msra.mxu0 %v262
        %353 = vmatprep.subr.mxu0 0.0
        %354 = vmatpush1.xpose.msra.mxu0 %v265
        %355 = vmatprep.subr.mxu0 0.0
        %356 = vmatpush1.xpose.msra.mxu0 %v268
        %357 = vmatprep.subr.mxu0 0.0
        %358 = vmatpush1.xpose.msra.mxu0 %v271
        %359 = vmatprep.subr.mxu0 0.0
        %360 = vmatpush1.xpose.msra.mxu0 %v274
        %361 = vmatprep.subr.mxu0 0.0
        %362 = vmatpush1.xpose.msra.mxu0 %v277
        %363 = vmatprep.subr.mxu0 0.0
        %364 = vmatpush1.xpose.msra.mxu0 %v280
        %365 = vmatprep.subr.mxu0 0.0
        %366 = vmatpush1.xpose.msra.mxu0 %v283
        %367 = vmatprep.subr.mxu0 0.0
        %368 = vmatpush1.xpose.msra.mxu0 %v286
        %369 = vmatprep.subr.mxu0 0.0
        %370 = vmatpush1.xpose.msra.mxu0 %v289
        %371 = vmatprep.subr.mxu0 0.0
        %372 = vmatpush1.xpose.msra.mxu0 %v292
        %373 = vmatprep.subr.mxu0 0.0
        %374 = vmatpush1.xpose.msra.mxu0 %v295
        %375 = vmatprep.subr.mxu0 0.0
        %376 = vmatpush1.xpose.msra.mxu0 %v298
        %377 = vmatprep.subr.mxu0 0.0
        %378 = vmatpush1.xpose.msra.mxu0 %v301
        %379 = vmatprep.subr.mxu0 0.0
        %380 = vmatpush1.xpose.msra.mxu0 %v304
        %381 = vmatprep.subr.mxu0 0.0
        %382 = vmatpush1.xpose.msra.mxu0 %v307
        %383 = vmatprep.subr.mxu0 0.0
        %384 = vmatpush1.xpose.msra.mxu0 %v310
        %385 = vmatprep.subr.mxu0 0.0
        %386 = vmatpush1.xpose.msra.mxu0 %v313
        %387 = vmatprep.subr.mxu0 0.0
        %388 = vmatpush1.xpose.msra.mxu0 %v316
        %389 = vmatprep.subr.mxu0 0.0
        %390 = vmatpush1.xpose.msra.mxu0 %v319
        %391 = vmatprep.subr.mxu0 0.0
        %392 = vmatpush1.xpose.msra.mxu0 %v322
        %393 = vmatprep.subr.mxu0 0.0
        %394 = vmatpush1.xpose.msra.mxu0 %v325
        %395 = vmatprep.subr.mxu0 0.0
        %396 = vmatpush1.xpose.msra.mxu0 %v328
        %397 = vmatprep.subr.mxu0 0.0
        %398 = vmatpush1.xpose.msra.mxu0 %v331
        %399 = vmatprep.subr.mxu0 0.0
        %400 = vmatpush1.xpose.msra.mxu0 %v334
        %401 = vmatprep.subr.mxu0 0.0
        %402 = vmatpush1.xpose.msra.mxu0 %v337
        %403 = vmatprep.mubr.f32.mxu0 0.0
        %404 = vmatmul.mubr.f32.gmra.mrb[0].mxu0 %v241
        %v405 = vpop.f32.mrb[0].mxu0
        %v406 = vadd.f32 0.0, %v405
        %v407 = vpop.f32.mrb[0].mxu0
        %v408 = vadd.f32 0.0, %v407
        %409 = vdwg.mxu0
        %s410 = sld [smem:[#allocation2]]
        %v411 = vstv %s410
        %v412 = vadd.f32 %v406, %v411
        %v413 = vadd.f32 %v408, %v411
        %vm414 = vcmask 1040384
        %v415 = vsel %vm414, %v412, -inf
        %v416 = vsel %vm414, %v413, -inf
        %v417 = vmax.f32 %v415, %v416
        %418 = vmax.xlane.f32.xlu0 %v417
        %v419 = vpop.xlane.xlu0 %418
        %v420 = vsub.f32 %v412, %v419
        %v421 = vsub.f32 %v413, %v419
        %v422 = vmul.f32 %v420, 1.442695
        %v423 = vpow.pop %v422
        %v424 = vmul.f32 %v421, 1.442695
        %v425 = vpow.pop %v424
        %v426 = vsel %vm414, %v423, 0.0
        %v427 = vsel %vm414, %v425, 0.0
        %v428 = vadd.f32 %v426, %v427
        %429 = vadd.xlane.f32.xlu0 %v428
        %v430 = vpop.xlane.xlu0 %429
        %v431 = vrcp.pop %v430
        %v432 = vmul.f32 %v423, %v431
        %v433 = vmul.f32 %v425, %v431
        %v434 = vadd.f32 %v432, 1e-08
        %v435 = vadd.f32 %v433, 1e-08
        %v436 = vsub.f32 0.0, %v434
        %v437 = vsub.f32 0.0, %v435
        %v438 = vlog2.pop %v434
        %v439 = vmul.f32 %v438, 0.6931472
        %v440 = vlog2.pop %v435
        %v441 = vmul.f32 %v440, 0.6931472
        %v442 = vmul.f32 %v436, %v439
        %v443 = vmul.f32 %v437, %v441
        %v444 = vrcp.pop 0.6931472
        %v445 = vmul.f32 %v442, %v444
        %v446 = vmul.f32 %v443, %v444
        %v447 = vlaneseq
        %v448 = vand.u32 %v447, 127
        %v449 = vadd.s32 %v448, 128
        %450 = vrot.lane.b32.xlu0 %v445, 5
        %v451 = vpop.permute.xlu0 %450
        %452 = vrot.lane.b32.xlu0 %v446, 5
        %v453 = vpop.permute.xlu0 %452
        %vm454 = vcmp.lt.s32.totalorder %v448, 5
        %v455 = vsel %vm454, %v451, %v453
        %v456 = vsel %vm454, %v453, %v451
        %v457 = vadd.s32 %v448, 4294967291
        %v458 = vadd.s32 %v449, 4294967291
        %vm459 = vcmp.ge.s32.totalorder %v457, 0
        %vm460 = vcmp.ge.s32.totalorder %v458, 0
        %vm461 = vcmp.lt.s32.totalorder %v457, 256
        %vm462 = vcmp.lt.s32.totalorder %v458, 256
        %vm463 = vmand %vm459, %vm461
        %vm464 = vmand %vm460, %vm462
        %v465 = vsel %vm463, %v456, 0.0
        %v466 = vsel %vm464, %v455, 0.0
        %v467 = vmul.f32 %v465, 0.008764151
        %v468 = vmul.f32 %v466, 0.008764151
        %v469 = vadd.f32 %v467, 0.0
        %v470 = vadd.f32 %v468, 0.0
        %471 = vrot.lane.b32.xlu0 %v445, 4
        %v472 = vpop.permute.xlu0 %471
        %473 = vrot.lane.b32.xlu0 %v446, 4
        %v474 = vpop.permute.xlu0 %473
        %vm475 = vcmp.lt.s32.totalorder %v448, 4
        %v476 = vsel %vm475, %v472, %v474
        %v477 = vsel %vm475, %v474, %v472
        %v478 = vadd.s32 %v448, 4294967292
        %v479 = vadd.s32 %v449, 4294967292
        %vm480 = vcmp.ge.s32.totalorder %v478, 0
        %vm481 = vcmp.ge.s32.totalorder %v479, 0
        %vm482 = vcmp.lt.s32.totalorder %v478, 256
        %vm483 = vcmp.lt.s32.totalorder %v479, 256
        %vm484 = vmand %vm480, %vm482
        %vm485 = vmand %vm481, %vm483
        %v486 = vsel %vm484, %v477, 0.0
        %v487 = vsel %vm485, %v476, 0.0
        %v488 = vmul.f32 %v486, 0.026995484
        %v489 = vmul.f32 %v487, 0.026995484
        %v490 = vadd.f32 %v469, %v488
        %v491 = vadd.f32 %v470, %v489
        %492 = vrot.lane.b32.xlu0 %v445, 3
        %v493 = vpop.permute.xlu0 %492
        %494 = vrot.lane.b32.xlu0 %v446, 3
        %v495 = vpop.permute.xlu0 %494
        %vm496 = vcmp.lt.s32.totalorder %v448, 3
        %v497 = vsel %vm496, %v493, %v495
        %v498 = vsel %vm496, %v495, %v493
        %v499 = vadd.s32 %v448, 4294967293
        %v500 = vadd.s32 %v449, 4294967293
        %vm501 = vcmp.ge.s32.totalorder %v499, 0
        %vm502 = vcmp.ge.s32.totalorder %v500, 0
        %vm503 = vcmp.lt.s32.totalorder %v499, 256
        %vm504 = vcmp.lt.s32.totalorder %v500, 256
        %vm505 = vmand %vm501, %vm503
        %vm506 = vmand %vm502, %vm504
        %v507 = vsel %vm505, %v498, 0.0
        %v508 = vsel %vm506, %v497, 0.0
        %v509 = vmul.f32 %v507, 0.0647588
        %v510 = vmul.f32 %v508, 0.0647588
        %v511 = vadd.f32 %v490, %v509
        %v512 = vadd.f32 %v491, %v510
        %513 = vrot.lane.b32.xlu0 %v445, 2
        %v514 = vpop.permute.xlu0 %513
        %515 = vrot.lane.b32.xlu0 %v446, 2
        %v516 = vpop.permute.xlu0 %515
        %vm517 = vcmp.lt.s32.totalorder %v448, 2
        %v518 = vsel %vm517, %v514, %v516
        %v519 = vsel %vm517, %v516, %v514
        %v520 = vadd.s32 %v448, 4294967294
        %v521 = vadd.s32 %v449, 4294967294
        %vm522 = vcmp.ge.s32.totalorder %v520, 0
        %vm523 = vcmp.ge.s32.totalorder %v521, 0
        %vm524 = vcmp.lt.s32.totalorder %v520, 256
        %vm525 = vcmp.lt.s32.totalorder %v521, 256
        %vm526 = vmand %vm522, %vm524
        %vm527 = vmand %vm523, %vm525
        %v528 = vsel %vm526, %v519, 0.0
        %v529 = vsel %vm527, %v518, 0.0
        %v530 = vmul.f32 %v528, 0.12098536
        %v531 = vmul.f32 %v529, 0.12098536
        %v532 = vadd.f32 %v511, %v530
        %v533 = vadd.f32 %v512, %v531
        %534 = vrot.lane.b32.xlu0 %v445, 1
        %v535 = vpop.permute.xlu0 %534
        %536 = vrot.lane.b32.xlu0 %v446, 1
        %v537 = vpop.permute.xlu0 %536
        %vm538 = vcmp.lt.s32.totalorder %v448, 1
        %v539 = vsel %vm538, %v535, %v537
        %v540 = vsel %vm538, %v537, %v535
        %v541 = vadd.s32 %v448, 4294967295
        %v542 = vadd.s32 %v449, 4294967295
        %vm543 = vcmp.ge.s32.totalorder %v541, 0
        %vm544 = vcmp.ge.s32.totalorder %v542, 0
        %vm545 = vcmp.lt.s32.totalorder %v541, 256
        %vm546 = vcmp.lt.s32.totalorder %v542, 256
        %vm547 = vmand %vm543, %vm545
        %vm548 = vmand %vm544, %vm546
        %v549 = vsel %vm547, %v540, 0.0
        %v550 = vsel %vm548, %v539, 0.0
        %v551 = vmul.f32 %v549, 0.17603266
        %v552 = vmul.f32 %v550, 0.17603266
        %v553 = vadd.f32 %v532, %v551
        %v554 = vadd.f32 %v533, %v552
        %vm555 = vcmp.ge.s32.totalorder %v448, 0
        %vm556 = vcmp.ge.s32.totalorder %v449, 0
        %vm557 = vcmp.lt.s32.totalorder %v448, 256
        %vm558 = vcmp.lt.s32.totalorder %v449, 256
        %vm559 = vmand %vm555, %vm557
        %vm560 = vmand %vm556, %vm558
        %v561 = vsel %vm559, %v445, 0.0
        %v562 = vsel %vm560, %v446, 0.0
        %v563 = vmul.f32 %v561, 0.19947115
        %v564 = vmul.f32 %v562, 0.19947115
        %v565 = vadd.f32 %v553, %v563
        %v566 = vadd.f32 %v554, %v564
        %567 = vrot.lane.b32.xlu0 %v445, 127
        %v568 = vpop.permute.xlu0 %567
        %569 = vrot.lane.b32.xlu0 %v446, 127
        %v570 = vpop.permute.xlu0 %569
        %vm571 = vcmp.lt.s32.totalorder %v448, 127
        %v572 = vsel %vm571, %v568, %v570
        %v573 = vsel %vm571, %v570, %v568
        %v574 = vadd.s32 %v448, 1
        %v575 = vadd.s32 %v449, 1
        %vm576 = vcmp.ge.s32.totalorder %v574, 0
        %vm577 = vcmp.ge.s32.totalorder %v575, 0
        %vm578 = vcmp.lt.s32.totalorder %v574, 256
        %vm579 = vcmp.lt.s32.totalorder %v575, 256
        %vm580 = vmand %vm576, %vm578
        %vm581 = vmand %vm577, %vm579
        %v582 = vsel %vm580, %v572, 0.0
        %v583 = vsel %vm581, %v573, 0.0
        %v584 = vmul.f32 %v582, 0.17603266
        %v585 = vmul.f32 %v583, 0.17603266
        %v586 = vadd.f32 %v565, %v584
        %v587 = vadd.f32 %v566, %v585
        %588 = vrot.lane.b32.xlu0 %v445, 126
        %v589 = vpop.permute.xlu0 %588
        %590 = vrot.lane.b32.xlu0 %v446, 126
        %v591 = vpop.permute.xlu0 %590
        %vm592 = vcmp.lt.s32.totalorder %v448, 126
        %v593 = vsel %vm592, %v589, %v591
        %v594 = vsel %vm592, %v591, %v589
        %v595 = vadd.s32 %v448, 2
        %v596 = vadd.s32 %v449, 2
        %vm597 = vcmp.ge.s32.totalorder %v595, 0
        %vm598 = vcmp.ge.s32.totalorder %v596, 0
        %vm599 = vcmp.lt.s32.totalorder %v595, 256
        %vm600 = vcmp.lt.s32.totalorder %v596, 256
        %vm601 = vmand %vm597, %vm599
        %vm602 = vmand %vm598, %vm600
        %v603 = vsel %vm601, %v593, 0.0
        %v604 = vsel %vm602, %v594, 0.0
        %v605 = vmul.f32 %v603, 0.12098536
        %v606 = vmul.f32 %v604, 0.12098536
        %v607 = vadd.f32 %v586, %v605
        %v608 = vadd.f32 %v587, %v606
        %609 = vrot.lane.b32.xlu0 %v445, 125
        %v610 = vpop.permute.xlu0 %609
        %611 = vrot.lane.b32.xlu0 %v446, 125
        %v612 = vpop.permute.xlu0 %611
        %vm613 = vcmp.lt.s32.totalorder %v448, 125
        %v614 = vsel %vm613, %v610, %v612
        %v615 = vsel %vm613, %v612, %v610
        %v616 = vadd.s32 %v448, 3
        %v617 = vadd.s32 %v449, 3
        %vm618 = vcmp.ge.s32.totalorder %v616, 0
        %vm619 = vcmp.ge.s32.totalorder %v617, 0
        %vm620 = vcmp.lt.s32.totalorder %v616, 256
        %vm621 = vcmp.lt.s32.totalorder %v617, 256
        %vm622 = vmand %vm618, %vm620
        %vm623 = vmand %vm619, %vm621
        %v624 = vsel %vm622, %v614, 0.0
        %v625 = vsel %vm623, %v615, 0.0
        %v626 = vmul.f32 %v624, 0.0647588
        %v627 = vmul.f32 %v625, 0.0647588
        %v628 = vadd.f32 %v607, %v626
        %v629 = vadd.f32 %v608, %v627
        %630 = vrot.lane.b32.xlu0 %v445, 124
        %v631 = vpop.permute.xlu0 %630
        %632 = vrot.lane.b32.xlu0 %v446, 124
        %v633 = vpop.permute.xlu0 %632
        %vm634 = vcmp.lt.s32.totalorder %v448, 124
        %v635 = vsel %vm634, %v631, %v633
        %v636 = vsel %vm634, %v633, %v631
        %v637 = vadd.s32 %v448, 4
        %v638 = vadd.s32 %v449, 4
        %vm639 = vcmp.ge.s32.totalorder %v637, 0
        %vm640 = vcmp.ge.s32.totalorder %v638, 0
        %vm641 = vcmp.lt.s32.totalorder %v637, 256
        %vm642 = vcmp.lt.s32.totalorder %v638, 256
        %vm643 = vmand %vm639, %vm641
        %vm644 = vmand %vm640, %vm642
        %v645 = vsel %vm643, %v635, 0.0
        %v646 = vsel %vm644, %v636, 0.0
        %v647 = vmul.f32 %v645, 0.026995484
        %v648 = vmul.f32 %v646, 0.026995484
        %v649 = vadd.f32 %v628, %v647
        %v650 = vadd.f32 %v629, %v648
        %651 = vrot.lane.b32.xlu0 %v445, 123
        %v652 = vpop.permute.xlu0 %651
        %653 = vrot.lane.b32.xlu0 %v446, 123
        %v654 = vpop.permute.xlu0 %653
        %vm655 = vcmp.lt.s32.totalorder %v448, 123
        %v656 = vsel %vm655, %v652, %v654
        %v657 = vsel %vm655, %v654, %v652
        %v658 = vadd.s32 %v448, 5
        %v659 = vadd.s32 %v449, 5
        %vm660 = vcmp.ge.s32.totalorder %v658, 0
        %vm661 = vcmp.ge.s32.totalorder %v659, 0
        %vm662 = vcmp.lt.s32.totalorder %v658, 256
        %vm663 = vcmp.lt.s32.totalorder %v659, 256
        %vm664 = vmand %vm660, %vm662
        %vm665 = vmand %vm661, %vm663
        %v666 = vsel %vm664, %v656, 0.0
        %v667 = vsel %vm665, %v657, 0.0
        %v668 = vmul.f32 %v666, 0.008764151
        %v669 = vmul.f32 %v667, 0.008764151
        %v670 = vadd.f32 %v649, %v668
        %v671 = vadd.f32 %v650, %v669
        %672 = vrot.lane.b32.xlu0 %v670, 1
        %v673 = vpop.permute.xlu0 %672
        %674 = vrot.lane.b32.xlu0 %v671, 1
        %v675 = vpop.permute.xlu0 %674
        %v676 = vsel %vm538, %v673, %v675
        %v677 = vsel %vm538, %v675, %v673
        %v678 = vsel %vm547, %v677, 0.0
        %v679 = vsel %vm548, %v676, 0.0
        %v680 = vmul.f32 %v678, -1.0
        %v681 = vmul.f32 %v679, -1.0
        %v682 = vadd.f32 %v680, 0.0
        %v683 = vadd.f32 %v681, 0.0
        %v684 = vsel %vm559, %v670, 0.0
        %v685 = vsel %vm560, %v671, 0.0
        %v686 = vmul.f32 %v684, 2.0
        %v687 = vmul.f32 %v685, 2.0
        %v688 = vadd.f32 %v682, %v686
        %v689 = vadd.f32 %v683, %v687
        %690 = vrot.lane.b32.xlu0 %v670, 127
        %v691 = vpop.permute.xlu0 %690
        %692 = vrot.lane.b32.xlu0 %v671, 127
        %v693 = vpop.permute.xlu0 %692
        %v694 = vsel %vm571, %v691, %v693
        %v695 = vsel %vm571, %v693, %v691
        %v696 = vsel %vm580, %v694, 0.0
        %v697 = vsel %vm581, %v695, 0.0
        %v698 = vmul.f32 %v696, -1.0
        %v699 = vmul.f32 %v697, -1.0
        %v700 = vadd.f32 %v688, %v698
        %v701 = vadd.f32 %v689, %v699
        %vm702 = vcmp.gt.f32.partialorder %v700, 0.0
        %vm703 = vcmp.gt.f32.partialorder %v701, 0.0
        %v704 = vsel %vm702, 1, 0
        %v705 = vsel %vm703, 1, 0
        %v706 = vcvt.s32.f32 %v704
        %v707 = vcvt.s32.f32 %v705
        %v710 = vcombine.low %v670, %v671
        %v712 = vunpack.c.l.s4 1966171168
        %v713 = vunpack.c.0.s8 %v712
        %v714 = vlaneseq
        %v715 = vshrl.u32 %v714, 7
        %v716 = vsub.s32 %v713, %v715
        %v717 = vrot.slane %v710, %v716
        %v719 = vunpack.c.l.s4 1966171168
        %v720 = vunpack.c.0.s8 %v719
        %v721 = vlaneseq
        %v722 = vshrl.u32 %v721, 7
        %v723 = vsub.s32 %v720, %v722
        %v724 = vrot.slane %v717, %v723
        %v726 = vlaneseq
        %vm727 = vcmp.ge.s32.totalorder %v726, 0
        %vm728 = vcmp.lt.s32.totalorder %v726, 256
        %vm729 = vmand %vm727, %vm728
        %730 = vst.msk [vmem:[%s192] sm:$0x3] %vm729, %v724
        %731 = vrot.lane.b32.xlu0 %v706, 1
        %v732 = vpop.permute.xlu0 %731
        %733 = vrot.lane.b32.xlu0 %v707, 1
        %v734 = vpop.permute.xlu0 %733
        %v735 = vsel %vm538, %v732, %v734
        %v736 = vsel %vm538, %v734, %v732
        %vm737 = vcmp.ge.s32.totalorder %v448, 1
        %vm738 = vcmp.ge.s32.totalorder %v449, 1
        %v739 = vsub.f32 %v706, %v736
        %v740 = vsub.f32 %v707, %v735
        %v741 = vand.u32 2147483647, %v739
        %v742 = vand.u32 2147483647, %v740
        %v743 = vsel %vm737, %v741, 0.0
        %v744 = vsel %vm738, %v742, 0.0
        %v745 = vsel %vm414, %v743, 0.0
        %v746 = vsel %vm414, %v744, 0.0
        %v747 = vadd.f32 %v745, %v746
        %748 = vadd.xlane.f32.xlu0 %v747
        %v749 = vpop.xlane.xlu0 %748
        %vm750 = vcmask 0
        %751 = vst.msk [vmem:[%s205] sm:$0x1] %vm750, %v749
        %s752 = sand.u32 %s96, 1
        %s753 = scalar_lea.sflag [#allocation4], %s752
        %s754 = sand.u32 %s96, 1
        %s755 = smul.addr %s754, 2
        %s756 = scalar_lea.vmem [#allocation3], %s755
        %p757 = scmp.lt.s32.totalorder %s20, 1
        %s758 = scalar_select %p757, %s20, 1
        %s759 = scalar_lea.vmem %s4, %s758
        // Predicated region
        $region33: #{tpu_custom_call.1} parent=31 // pred_check
          %p760 = pneg %p106
        $region34: #{tpu_custom_call.1} parent=31 // pred_check_branch
          %762 = sbr.rel (%p760) target = $region36
        $region35: #{tpu_custom_call.1} parent=31 // pred_region
          %s764 = ssub.s32 32, 32
          %765 = vsyncadd %s753, %s764
          %s766 = smul.addr %s20, 2
          %s767 = smul.addr %s766, 16
          %s768 = scalar_lea.hbm %s3, %s767
          %s770 = sshll.u32 %s756, 4
          %s771 = int_to_ptr.vmem [resolvable:$true] %s770
          %773 = dma.vmem_to_hbm [thread:$0]  %s771, 32, %s768, %s753
        $region36: #{tpu_custom_call.1} parent=31 // pred_fallthru
          _
        // Predicated region
        $region37: #{tpu_custom_call.1} parent=31 // pred_check
          %p774 = pneg %p132
        $region38: #{tpu_custom_call.1} parent=31 // pred_check_branch
          %776 = sbr.rel (%p774) target = $region40
        $region39: #{tpu_custom_call.1} parent=31 // pred_region
          _
        $region40: #{tpu_custom_call.1} parent=31 // pred_fallthru
          _
      $region32: #{tpu_custom_call.1} parent=5 // pred_fallthru
        _
      %p777 = scmp.le.s32.totalorder 2, %s15
      // Predicated region
      $region41: #{tpu_custom_call.1} parent=5 // pred_check
        %p778 = pneg %p777
      $region42: #{tpu_custom_call.1} parent=5 // pred_check_branch
        %780 = sbr.rel (%p778) target = $region44
      $region43: #{tpu_custom_call.1} parent=5 // pred_region
        %s781 = ssub.s32 %s15, 2
        // Predicated region
        $region45: #{tpu_custom_call.1} parent=43 // pred_check
          %p782 = pneg %p112
        $region46: #{tpu_custom_call.1} parent=43 // pred_check_branch
          %784 = sbr.rel (%p782) target = $region48
        $region47: #{tpu_custom_call.1} parent=43 // pred_region
          %s785 = sand.u32 %s97, 1
          %s786 = scalar_lea.sflag [#allocation4], %s785
          %s787 = sand.u32 %s97, 1
          %s788 = smul.addr %s787, 2
          %s789 = scalar_lea.vmem [#allocation3], %s788
          %790 = dma.done %s786, 32
        $region48: #{tpu_custom_call.1} parent=43 // pred_fallthru
          _
        // Predicated region
        $region49: #{tpu_custom_call.1} parent=43 // pred_check
          %p791 = pneg %p138
        $region50: #{tpu_custom_call.1} parent=43 // pred_check_branch
          %793 = sbr.rel (%p791) target = $region52
        $region51: #{tpu_custom_call.1} parent=43 // pred_region
          %p794 = scmp.lt.s32.totalorder %s21, 1
          %s795 = scalar_select %p794, %s21, 1
          %s796 = scalar_lea.vmem %s4, %s795
        $region52: #{tpu_custom_call.1} parent=43 // pred_fallthru
          _
      $region44: #{tpu_custom_call.1} parent=5 // pred_fallthru
        _
    $region6: #{tpu_custom_call.1} parent=1 // loop_footer
      %s19 = sadd.s32 1, %s15
    $region7: #{tpu_custom_call.1} parent=1 // loop_footer_branch
      %14 = sbr.rel target = $region3
    $region8: #{tpu_custom_call.1} parent=1 // loop_exit
      _
    %797 = vsyncpa [#allocation4], 1
    %s798 = scalar_lea.sflag [#allocation4], 1
    %799 = vsyncpa %s798, 1

</llo_original>
